<compile_context>
chip_gen: v5e
topology: v5e:2x2
jax: 0.10.0
libtpu: 0.0.40
codegen_flags: <defaults>
</compile_context>

<pallas_src>
import functools

import numpy as np
import jax
import jax.numpy as jnp
from jax.experimental import pallas as pl
from jax.experimental.pallas import tpu as pltpu


def _round_up(x, m):
    return ((x + m - 1) // m) * m


# --------------------------------------------------------------------------
# Fused Pallas kernel: all 5 losses in one pass
# --------------------------------------------------------------------------
def _make_fused_loss_kernel(B, Q, BP, QP, eos_coef):
    eos = float(eos_coef)
    need_b_mask = (B != BP)
    need_q_mask = (Q != QP)

    def kernel(tlen_ref, x_ref, out_ref):
        # x_ref: (10, BP, QP) packed planes, zero padded past (B, Q)
        l0 = x_ref[0]                       # foreground logits
        l1 = x_ref[1]                       # background logits
        scx, scy, sw, sh = x_ref[2], x_ref[3], x_ref[4], x_ref[5]   # pred boxes
        tcx, tcy, tw, th = x_ref[6], x_ref[7], x_ref[8], x_ref[9]   # tgt boxes

        bi = jax.lax.broadcasted_iota(jnp.int32, (BP, QP), 0)
        qi = jax.lax.broadcasted_iota(jnp.int32, (BP, QP), 1)

        # per-row target count broadcast from SMEM scalars (identity matching:
        # query q of batch b is matched iff q < tgt_len[b]).
        # TODO(synk): for large B replace this static select tree with a
        # lane-dense int32 input plane (still one packed DMA).
        tlen_plane = jnp.zeros((BP, QP), jnp.int32)
        for b in range(B):
            tlen_plane = jnp.where(bi == b, tlen_ref[b], tlen_plane)
        mask = jnp.where(qi < tlen_plane, 1.0, 0.0)     # matched-query mask

        # trace-time specialized padding mask; folded once into wt / fgv below
        valid = None
        if need_b_mask and need_q_mask:
            valid = jnp.where((bi < B) & (qi < Q), 1.0, 0.0)
        elif need_b_mask:
            valid = jnp.where(bi < B, 1.0, 0.0)
        elif need_q_mask:
            valid = jnp.where(qi < Q, 1.0, 0.0)

        n_match = jnp.sum(mask)
        n_safe = jnp.maximum(n_match, 1.0)      # 0/0 guard (no matched boxes)

        # ---- weighted cross-entropy ('loss_label') -------------------------
        # CE = logsumexp(l0, l1) - l_target = softplus(l_other - l_target)
        d = (l0 - l1) * (1.0 - 2.0 * mask)
        sp = jnp.maximum(d, 0.0) + jnp.log(1.0 + jnp.exp(-jnp.abs(d)))
        wt = eos + (1.0 - eos) * mask           # 1.0 matched, eos_coef else
        if valid is not None:
            wt = wt * valid
        # torch: reduction='none' then .mean()  ->  divide by B*Q
        loss_label = jnp.sum(sp * wt) * (1.0 / float(B * Q))

        # ---- class_error (accuracy on matched queries) ----------------------
        pred_is_fg = jnp.where(l0 >= l1, 1.0, 0.0)   # argmax tie -> class 0
        fgv = pred_is_fg if valid is None else pred_is_fg * valid
        correct = jnp.sum(fgv * mask)
        class_err = 100.0 - 100.0 * correct / n_safe

        # ---- cardinality_error ----------------------------------------------
        # sum_q mask[b, :] == tgt_len[b], so no tlen column is needed.
        row_diff = jnp.sum(fgv - mask, axis=1, keepdims=True)   # (BP, 1)
        card_err = jnp.sum(jnp.abs(row_diff)) * (1.0 / float(B))

        # ---- box L1 loss -----------------------------------------------------
        l1_plane = (jnp.abs(scx - tcx) + jnp.abs(scy - tcy)
                    + jnp.abs(sw - tw) + jnp.abs(sh - th))
        loss_bbox = jnp.sum(l1_plane * mask) / (4.0 * n_safe)

        # ---- GIoU loss -------------------------------------------------------
        sx0 = scx - 0.5 * sw; sy0 = scy - 0.5 * sh
        sx1 = scx + 0.5 * sw; sy1 = scy + 0.5 * sh
        tx0 = tcx - 0.5 * tw; ty0 = tcy - 0.5 * th
        tx1 = tcx + 0.5 * tw; ty1 = tcy + 0.5 * th

        area_s = (sx1 - sx0) * (sy1 - sy0)
        area_t = (tx1 - tx0) * (ty1 - ty0)
        iw = jnp.maximum(jnp.minimum(sx1, tx1) - jnp.maximum(sx0, tx0), 0.0)
        ih = jnp.maximum(jnp.minimum(sy1, ty1) - jnp.maximum(sy0, ty0), 0.0)
        inter = iw * ih
        union = area_s + area_t - inter
        ew = jnp.maximum(jnp.maximum(sx1, tx1) - jnp.minimum(sx0, tx0), 0.0)
        eh = jnp.maximum(jnp.maximum(sy1, ty1) - jnp.minimum(sy0, ty0), 0.0)
        earea = ew * eh

        # guard unmatched / padded lanes so 1/0 never produces NaN * 0 = NaN
        union_g = jnp.where(mask > 0.5, union, 1.0)
        earea_g = jnp.where(mask > 0.5, earea, 1.0)
        giou = inter / union_g - (earea - union) / earea_g   # exact division
        loss_giou = jnp.sum((1.0 - giou) * mask) / n_safe

        # ---- single lane-dense output row -----------------------------------
        lane = jax.lax.broadcasted_iota(jnp.int32, (1, 128), 1)
        row = jnp.zeros((1, 128), jnp.float32)
        for k, v in enumerate((loss_label, class_err, card_err,
                               loss_bbox, loss_giou)):
            row = jnp.where(lane == k, v, row)
        out_ref[...] = row

    return kernel


# --------------------------------------------------------------------------
# pallas_call wrapper (one fused launch, scalar-prefetched tgt lengths)
# --------------------------------------------------------------------------
def _fused_set_criterion_call(tlen, packed, *, B, Q, eos_coef):
    nplanes, BP, QP = packed.shape
    kernel = _make_fused_loss_kernel(B, Q, BP, QP, eos_coef)
    grid_spec = pltpu.PrefetchScalarGridSpec(
        num_scalar_prefetch=1,
        grid=(1,),
        # index_maps receive the scalar-prefetch refs as trailing args
        in_specs=[pl.BlockSpec((nplanes, BP, QP), lambda i, tlen_ref: (0, 0, 0))],
        out_specs=pl.BlockSpec((1, 128), lambda i, tlen_ref: (0, 0)),
    )
    return pl.pallas_call(
        kernel,
        grid_spec=grid_spec,
        out_shape=jax.ShapeDtypeStruct((1, 128), jnp.float32),
        compiler_params=pltpu.CompilerParams(
            dimension_semantics=("arbitrary",)),
    )(tlen, packed)


# --------------------------------------------------------------------------
# Whole forward path (pad / transpose / pack / kernel / slice) under one jit
# --------------------------------------------------------------------------
@functools.partial(jax.jit, static_argnames=("eos_coef",))
def _set_criterion_forward(pred_logits, pred_boxes, tgt_boxes_dense,
                           tgt_lengths, *, eos_coef):
    # pred_logits: (B, Q, 2) ; pred_boxes: (B, Q, 4) cxcywh
    # tgt_boxes_dense: (B, Q, 4) zero padded (target j sits in query slot j)
    # tgt_lengths: (B,) int32
    B, Q, _ = pred_logits.shape
    BP = _round_up(max(B, 1), 8)
    QP = _round_up(max(Q, 1), 128)

    lg = pred_logits.astype(jnp.float32)
    pb = jnp.transpose(pred_boxes.astype(jnp.float32), (2, 0, 1))      # (4,B,Q)
    tb = jnp.transpose(tgt_boxes_dense.astype(jnp.float32), (2, 0, 1))  # (4,B,Q)

    # packed coordinate-major plane stack: queries on lanes, one DMA stream.
    packed = jnp.concatenate(
        [lg[..., 0][None], lg[..., 1][None], pb, tb], axis=0)           # (10,B,Q)
    packed = jnp.pad(packed, ((0, 0), (0, BP - B), (0, QP - Q)))

    tlen = jnp.pad(tgt_lengths.astype(jnp.int32), (0, BP - B))

    row = _fused_set_criterion_call(tlen, packed, B=B, Q=Q,
                                    eos_coef=float(eos_coef))
    return {
        "loss_label": row[0, 0],
        "class_error": row[0, 1],
        "cardinality_error": row[0, 2],
        "loss_bbox": row[0, 3],
        "loss_giou": row[0, 4],
    }


# --------------------------------------------------------------------------
# SetCriterion (Pallas) wrapper
# --------------------------------------------------------------------------
class SetCriterionPallas:
    # TODO(synk): aux_outputs / sketch_detr branches of the torch module are
    # host-side loops that would simply re-invoke the same jitted forward per
    # auxiliary head; only the main-output path is implemented here.
    def __init__(self, eos_coef=0.1, losses=("labels", "cardinality", "boxes")):
        self.eos_coef = float(eos_coef)
        self.losses = losses
        self.foreground_label = 0
        self.background_label = 1

    def matcher(self, outputs, targets):
        # TODO(synk): the real DETR matcher is Hungarian matching
        # (scipy.optimize.linear_sum_assignment); no clean Pallas equivalent,
        # so a deterministic identity matching (prediction j <-> target j) is
        # used.  With a real matcher, the permuted dense target buffer would
        # be passed to the jitted forward instead.
        lens = targets["tgt_lengths"]
        return [(np.arange(n, dtype=np.int32), np.arange(n, dtype=np.int32))
                for n in lens]

    def forward(self, outputs, targets):
        pred_logits = outputs["pred_logits"]        # [B, Q, 2]
        pred_boxes = outputs["pred_boxes"]          # [B, Q, 4] (cx,cy,w,h)
        B, Q, _ = pred_logits.shape

        indices = self.matcher(outputs, targets)    # identity matching

        # Densify the ragged host-side target list into fixed (B, Q, 4) /
        # (B,) buffers (unavoidable: data lives in Python lists).  Everything
        # downstream (pad / transpose / pack / kernel / slicing) is one jit.
        tgt_dense = np.zeros((B, Q, 4), dtype=np.float32)
        tlen = np.zeros((B,), dtype=np.int32)
        for b, (src, tgt_idx) in enumerate(indices):
            n = len(src)
            tlen[b] = n
            if n:
                tb = np.asarray(targets["boxes"][b],
                                dtype=np.float32)[np.asarray(tgt_idx)]
                tgt_dense[b, np.asarray(src)] = tb

        return _set_criterion_forward(
            pred_logits, pred_boxes,
            jnp.asarray(tgt_dense), jnp.asarray(tlen),
            eos_coef=self.eos_coef)


# --------------------------------------------------------------------------
# pure numpy reference (mirrors the PyTorch module semantics)
# --------------------------------------------------------------------------
def _reference(outputs, targets, indices, eos_coef):
    logits = np.asarray(outputs["pred_logits"], dtype=np.float64)
    boxes = np.asarray(outputs["pred_boxes"], dtype=np.float64)
    B, Q, C = logits.shape

    target_classes = np.full((B, Q), 1, dtype=np.int64)
    for b, (src, _) in enumerate(indices):
        target_classes[b, src] = 0
    w = np.array([1.0, eos_coef])
    lse = np.log(np.exp(logits).sum(-1))
    picked = np.take_along_axis(logits, target_classes[..., None], axis=-1)[..., 0]
    loss_label = ((lse - picked) * w[target_classes]).mean()

    pred = logits.argmax(-1)
    matched_pred = np.concatenate([pred[b, src] for b, (src, _) in enumerate(indices)])
    class_err = 100.0 - 100.0 * (matched_pred == 0).mean()

    card_pred = (pred != C - 1).sum(1).astype(np.float64)
    card_err = np.abs(card_pred - np.asarray(targets["tgt_lengths"], np.float64)).mean()

    src_b = np.concatenate([boxes[b][src] for b, (src, _) in enumerate(indices)])
    tgt_b = np.concatenate([np.asarray(targets["boxes"][b], np.float64)[t]
                            for b, (_, t) in enumerate(indices)])
    loss_bbox = np.abs(src_b - tgt_b).mean()

    def xyxy(bx):
        cx, cy, ww, hh = bx[:, 0], bx[:, 1], bx[:, 2], bx[:, 3]
        return np.stack([cx - ww / 2, cy - hh / 2, cx + ww / 2, cy + hh / 2], -1)

    s, t = xyxy(src_b), xyxy(tgt_b)
    area_s = (s[:, 2] - s[:, 0]) * (s[:, 3] - s[:, 1])
    area_t = (t[:, 2] - t[:, 0]) * (t[:, 3] - t[:, 1])
    iw = np.clip(np.minimum(s[:, 2], t[:, 2]) - np.maximum(s[:, 0], t[:, 0]), 0, None)
    ih = np.clip(np.minimum(s[:, 3], t[:, 3]) - np.maximum(s[:, 1], t[:, 1]), 0, None)
    inter = iw * ih
    union = area_s + area_t - inter
    iou = inter / union
    ew = np.clip(np.maximum(s[:, 2], t[:, 2]) - np.minimum(s[:, 0], t[:, 0]), 0, None)
    eh = np.clip(np.maximum(s[:, 3], t[:, 3]) - np.minimum(s[:, 1], t[:, 1]), 0, None)
    earea = ew * eh
    loss_giou = (1.0 - (iou - (earea - union) / earea)).mean()

    return dict(loss_label=loss_label, class_error=class_err,
                cardinality_error=card_err, loss_bbox=loss_bbox,
                loss_giou=loss_giou)


# --------------------------------------------------------------------------
if __name__ == "__main__":
    key = jax.random.PRNGKey(0)
    k1, k2, k3, k4 = jax.random.split(key, 4)

    B, Q, C = 2, 8, 2           # batch, num_queries, num_classes (fg/bg)
    tgt_lengths = [3, 2]        # GT boxes per batch element

    pred_logits = jax.random.normal(k1, (B, Q, C), dtype=jnp.float32)
    pred_boxes = jax.random.uniform(k2, (B, Q, 4), dtype=jnp.float32,
                                    minval=0.1, maxval=0.5)
    tgt_boxes = [
        jax.random.uniform(k3, (tgt_lengths[0], 4), dtype=jnp.float32,
                           minval=0.1, maxval=0.5),
        jax.random.uniform(k4, (tgt_lengths[1], 4), dtype=jnp.float32,
                           minval=0.1, maxval=0.5),
    ]

    outputs = {"pred_logits": pred_logits, "pred_boxes": pred_boxes}
    targets = {"tgt_lengths": tgt_lengths, "boxes": tgt_boxes}

    criterion = SetCriterionPallas(eos_coef=0.1,
                                   losses=("labels", "cardinality", "boxes"))
    losses = criterion.forward(outputs, targets)
    losses = jax.tree_util.tree_map(jax.block_until_ready, losses)

    ref = _reference(outputs, targets, criterion.matcher(outputs, targets),
                     criterion.eos_coef)
    # exact division in the GIoU path -> tight f32 tolerances again.
    for name, ref_val in ref.items():
        np.testing.assert_allclose(np.asarray(losses[name]), ref_val,
                                   rtol=1e-4, atol=1e-5)

    print("KERNEL_OK")
</pallas_src>

<mosaic_0001>
module attributes {stable_mosaic.version = 11 : i64} {
  func.func @kernel(%arg0: i32, %arg1: memref<8xi32, #tpu.memory_space<smem>>, %arg2: memref<10x8x128xf32, #tpu.memory_space<vmem>>, %arg3: memref<1x128xf32, #tpu.memory_space<vmem>>) attributes {dimension_semantics = [#tpu.dimension_semantics<arbitrary>], iteration_bounds = array<i64: 1>, scalar_prefetch = 1 : i64, scratch_operands = 0 : i64, tpu.core_type = #tpu.core_type<tc>, window_params = [{pipeline_mode = #tpu.pipeline_mode<synchronous>, transform_indices = @transform_0, window_bounds = array<i64: 10, 8, 128>}, {pipeline_mode = #tpu.pipeline_mode<synchronous>, transform_indices = @transform_1, window_bounds = array<i64: 1, 128>}]} {
    %c0 = arith.constant 0 : index
    %c0_0 = arith.constant 0 : index
    %c0_1 = arith.constant 0 : index
    %0 = vector.load %arg2[%c0, %c0_0, %c0_1] : memref<10x8x128xf32, #tpu.memory_space<vmem>>, vector<1x8x128xf32>
    %1 = vector.shape_cast %0 : vector<1x8x128xf32> to vector<8x128xf32>
    %c1 = arith.constant 1 : index
    %c0_2 = arith.constant 0 : index
    %c0_3 = arith.constant 0 : index
    %2 = vector.load %arg2[%c1, %c0_2, %c0_3] : memref<10x8x128xf32, #tpu.memory_space<vmem>>, vector<1x8x128xf32>
    %3 = vector.shape_cast %2 : vector<1x8x128xf32> to vector<8x128xf32>
    %c2 = arith.constant 2 : index
    %c0_4 = arith.constant 0 : index
    %c0_5 = arith.constant 0 : index
    %4 = vector.load %arg2[%c2, %c0_4, %c0_5] : memref<10x8x128xf32, #tpu.memory_space<vmem>>, vector<1x8x128xf32>
    %5 = vector.shape_cast %4 : vector<1x8x128xf32> to vector<8x128xf32>
    %c3 = arith.constant 3 : index
    %c0_6 = arith.constant 0 : index
    %c0_7 = arith.constant 0 : index
    %6 = vector.load %arg2[%c3, %c0_6, %c0_7] : memref<10x8x128xf32, #tpu.memory_space<vmem>>, vector<1x8x128xf32>
    %7 = vector.shape_cast %6 : vector<1x8x128xf32> to vector<8x128xf32>
    %c4 = arith.constant 4 : index
    %c0_8 = arith.constant 0 : index
    %c0_9 = arith.constant 0 : index
    %8 = vector.load %arg2[%c4, %c0_8, %c0_9] : memref<10x8x128xf32, #tpu.memory_space<vmem>>, vector<1x8x128xf32>
    %9 = vector.shape_cast %8 : vector<1x8x128xf32> to vector<8x128xf32>
    %c5 = arith.constant 5 : index
    %c0_10 = arith.constant 0 : index
    %c0_11 = arith.constant 0 : index
    %10 = vector.load %arg2[%c5, %c0_10, %c0_11] : memref<10x8x128xf32, #tpu.memory_space<vmem>>, vector<1x8x128xf32>
    %11 = vector.shape_cast %10 : vector<1x8x128xf32> to vector<8x128xf32>
    %c6 = arith.constant 6 : index
    %c0_12 = arith.constant 0 : index
    %c0_13 = arith.constant 0 : index
    %12 = vector.load %arg2[%c6, %c0_12, %c0_13] : memref<10x8x128xf32, #tpu.memory_space<vmem>>, vector<1x8x128xf32>
    %13 = vector.shape_cast %12 : vector<1x8x128xf32> to vector<8x128xf32>
    %c7 = arith.constant 7 : index
    %c0_14 = arith.constant 0 : index
    %c0_15 = arith.constant 0 : index
    %14 = vector.load %arg2[%c7, %c0_14, %c0_15] : memref<10x8x128xf32, #tpu.memory_space<vmem>>, vector<1x8x128xf32>
    %15 = vector.shape_cast %14 : vector<1x8x128xf32> to vector<8x128xf32>
    %c8 = arith.constant 8 : index
    %c0_16 = arith.constant 0 : index
    %c0_17 = arith.constant 0 : index
    %16 = vector.load %arg2[%c8, %c0_16, %c0_17] : memref<10x8x128xf32, #tpu.memory_space<vmem>>, vector<1x8x128xf32>
    %17 = vector.shape_cast %16 : vector<1x8x128xf32> to vector<8x128xf32>
    %c9 = arith.constant 9 : index
    %c0_18 = arith.constant 0 : index
    %c0_19 = arith.constant 0 : index
    %18 = vector.load %arg2[%c9, %c0_18, %c0_19] : memref<10x8x128xf32, #tpu.memory_space<vmem>>, vector<1x8x128xf32>
    %19 = vector.shape_cast %18 : vector<1x8x128xf32> to vector<8x128xf32>
    %20 = tpu.iota {dimensions = array<i32: 0>} : vector<8x128xi32>
    %21 = tpu.iota {dimensions = array<i32: 1>} : vector<8x128xi32>
    %c0_i32 = arith.constant 0 : i32
    %22 = vector.broadcast %c0_i32 : i32 to vector<8x128xi32>
    %c0_i32_20 = arith.constant 0 : i32
    %23 = vector.broadcast %c0_i32_20 : i32 to vector<8x128xi32>
    %24 = arith.cmpi eq, %20, %23 : vector<8x128xi32>
    %c0_21 = arith.constant 0 : index
    %25 = memref.load %arg1[%c0_21] : memref<8xi32, #tpu.memory_space<smem>>
    %26 = vector.broadcast %25 : i32 to vector<8x128xi32>
    %27 = arith.select %24, %26, %22 : vector<8x128xi1>, vector<8x128xi32>
    %c1_i32 = arith.constant 1 : i32
    %28 = vector.broadcast %c1_i32 : i32 to vector<8x128xi32>
    %29 = arith.cmpi eq, %20, %28 : vector<8x128xi32>
    %c1_22 = arith.constant 1 : index
    %30 = memref.load %arg1[%c1_22] : memref<8xi32, #tpu.memory_space<smem>>
    %31 = vector.broadcast %30 : i32 to vector<8x128xi32>
    %32 = arith.select %29, %31, %27 : vector<8x128xi1>, vector<8x128xi32>
    %33 = arith.cmpi slt, %21, %32 : vector<8x128xi32>
    %cst = arith.constant 1.000000e+00 : f32
    %cst_23 = arith.constant 0.000000e+00 : f32
    %34 = vector.broadcast %cst : f32 to vector<8x128xf32>
    %35 = vector.broadcast %cst_23 : f32 to vector<8x128xf32>
    %36 = arith.select %33, %34, %35 : vector<8x128xi1>, vector<8x128xf32>
    %c2_i32 = arith.constant 2 : i32
    %37 = vector.broadcast %c2_i32 : i32 to vector<8x128xi32>
    %38 = arith.cmpi slt, %20, %37 : vector<8x128xi32>
    %c8_i32 = arith.constant 8 : i32
    %39 = vector.broadcast %c8_i32 : i32 to vector<8x128xi32>
    %40 = arith.cmpi slt, %21, %39 : vector<8x128xi32>
    %41 = arith.andi %38, %40 : vector<8x128xi1>
    %cst_24 = arith.constant 1.000000e+00 : f32
    %cst_25 = arith.constant 0.000000e+00 : f32
    %42 = vector.broadcast %cst_24 : f32 to vector<8x128xf32>
    %43 = vector.broadcast %cst_25 : f32 to vector<8x128xf32>
    %44 = arith.select %41, %42, %43 : vector<8x128xi1>, vector<8x128xf32>
    %45 = vector.shape_cast %36 : vector<8x128xf32> to vector<1x8x128xf32>
    %cst_26 = arith.constant dense<0.000000e+00> : vector<1xf32>
    %46 = vector.multi_reduction <add>, %45, %cst_26 [1, 2] : vector<1x8x128xf32> to vector<1xf32>
    %47 = vector.shape_cast %46 : vector<1xf32> to vector<1x1x1xf32>
    %48 = vector.extract %47[0, 0, 0] : f32 from vector<1x1x1xf32>
    %cst_27 = arith.constant 1.000000e+00 : f32
    %49 = arith.maximumf %48, %cst_27 : f32
    %50 = arith.subf %1, %3 : vector<8x128xf32>
    %cst_28 = arith.constant 2.000000e+00 : f32
    %51 = vector.broadcast %cst_28 : f32 to vector<8x128xf32>
    %52 = arith.mulf %51, %36 : vector<8x128xf32>
    %cst_29 = arith.constant 1.000000e+00 : f32
    %53 = vector.broadcast %cst_29 : f32 to vector<8x128xf32>
    %54 = arith.subf %53, %52 : vector<8x128xf32>
    %55 = arith.mulf %50, %54 : vector<8x128xf32>
    %cst_30 = arith.constant 0.000000e+00 : f32
    %56 = vector.broadcast %cst_30 : f32 to vector<8x128xf32>
    %57 = arith.maximumf %55, %56 : vector<8x128xf32>
    %58 = math.absf %55 : vector<8x128xf32>
    %cst_31 = arith.constant 0.000000e+00 : f32
    %59 = vector.broadcast %cst_31 : f32 to vector<8x128xf32>
    %60 = arith.subf %59, %58 : vector<8x128xf32>
    %61 = math.exp %60 : vector<8x128xf32>
    %cst_32 = arith.constant 1.000000e+00 : f32
    %62 = vector.broadcast %cst_32 : f32 to vector<8x128xf32>
    %63 = arith.addf %62, %61 : vector<8x128xf32>
    %64 = math.log %63 : vector<8x128xf32>
    %65 = arith.addf %57, %64 : vector<8x128xf32>
    %cst_33 = arith.constant 0.899999976 : f32
    %66 = vector.broadcast %cst_33 : f32 to vector<8x128xf32>
    %67 = arith.mulf %66, %36 : vector<8x128xf32>
    %cst_34 = arith.constant 1.000000e-01 : f32
    %68 = vector.broadcast %cst_34 : f32 to vector<8x128xf32>
    %69 = arith.addf %68, %67 : vector<8x128xf32>
    %70 = arith.mulf %69, %44 : vector<8x128xf32>
    %71 = arith.mulf %65, %70 : vector<8x128xf32>
    %72 = vector.shape_cast %71 : vector<8x128xf32> to vector<1x8x128xf32>
    %cst_35 = arith.constant dense<0.000000e+00> : vector<1xf32>
    %73 = vector.multi_reduction <add>, %72, %cst_35 [1, 2] : vector<1x8x128xf32> to vector<1xf32>
    %74 = vector.shape_cast %73 : vector<1xf32> to vector<1x1x1xf32>
    %75 = vector.extract %74[0, 0, 0] : f32 from vector<1x1x1xf32>
    %cst_36 = arith.constant 6.250000e-02 : f32
    %76 = arith.mulf %75, %cst_36 : f32
    %77 = arith.cmpf oge, %1, %3 : vector<8x128xf32>
    %cst_37 = arith.constant 1.000000e+00 : f32
    %cst_38 = arith.constant 0.000000e+00 : f32
    %78 = vector.broadcast %cst_37 : f32 to vector<8x128xf32>
    %79 = vector.broadcast %cst_38 : f32 to vector<8x128xf32>
    %80 = arith.select %77, %78, %79 : vector<8x128xi1>, vector<8x128xf32>
    %81 = arith.mulf %80, %44 : vector<8x128xf32>
    %82 = arith.mulf %81, %36 : vector<8x128xf32>
    %83 = vector.shape_cast %82 : vector<8x128xf32> to vector<1x8x128xf32>
    %cst_39 = arith.constant dense<0.000000e+00> : vector<1xf32>
    %84 = vector.multi_reduction <add>, %83, %cst_39 [1, 2] : vector<1x8x128xf32> to vector<1xf32>
    %85 = vector.shape_cast %84 : vector<1xf32> to vector<1x1x1xf32>
    %86 = vector.extract %85[0, 0, 0] : f32 from vector<1x1x1xf32>
    %cst_40 = arith.constant 1.000000e+02 : f32
    %87 = arith.mulf %cst_40, %86 : f32
    %88 = arith.divf %87, %49 : f32
    %cst_41 = arith.constant 1.000000e+02 : f32
    %89 = arith.subf %cst_41, %88 : f32
    %90 = arith.subf %81, %36 : vector<8x128xf32>
    %cst_42 = arith.constant dense<0.000000e+00> : vector<8xf32>
    %91 = vector.multi_reduction <add>, %90, %cst_42 [1] : vector<8x128xf32> to vector<8xf32>
    %92 = vector.shape_cast %91 : vector<8xf32> to vector<8x1xf32>
    %93 = math.absf %92 : vector<8x1xf32>
    %94 = vector.shape_cast %93 : vector<8x1xf32> to vector<1x8x1xf32>
    %cst_43 = arith.constant dense<0.000000e+00> : vector<1xf32>
    %95 = vector.multi_reduction <add>, %94, %cst_43 [1, 2] : vector<1x8x1xf32> to vector<1xf32>
    %96 = vector.shape_cast %95 : vector<1xf32> to vector<1x1x1xf32>
    %97 = vector.extract %96[0, 0, 0] : f32 from vector<1x1x1xf32>
    %cst_44 = arith.constant 5.000000e-01 : f32
    %98 = arith.mulf %97, %cst_44 : f32
    %99 = arith.subf %5, %13 : vector<8x128xf32>
    %100 = math.absf %99 : vector<8x128xf32>
    %101 = arith.subf %7, %15 : vector<8x128xf32>
    %102 = math.absf %101 : vector<8x128xf32>
    %103 = arith.addf %100, %102 : vector<8x128xf32>
    %104 = arith.subf %9, %17 : vector<8x128xf32>
    %105 = math.absf %104 : vector<8x128xf32>
    %106 = arith.addf %103, %105 : vector<8x128xf32>
    %107 = arith.subf %11, %19 : vector<8x128xf32>
    %108 = math.absf %107 : vector<8x128xf32>
    %109 = arith.addf %106, %108 : vector<8x128xf32>
    %110 = arith.mulf %109, %36 : vector<8x128xf32>
    %111 = vector.shape_cast %110 : vector<8x128xf32> to vector<1x8x128xf32>
    %cst_45 = arith.constant dense<0.000000e+00> : vector<1xf32>
    %112 = vector.multi_reduction <add>, %111, %cst_45 [1, 2] : vector<1x8x128xf32> to vector<1xf32>
    %113 = vector.shape_cast %112 : vector<1xf32> to vector<1x1x1xf32>
    %114 = vector.extract %113[0, 0, 0] : f32 from vector<1x1x1xf32>
    %cst_46 = arith.constant 4.000000e+00 : f32
    %115 = arith.mulf %cst_46, %49 : f32
    %116 = arith.divf %114, %115 : f32
    %cst_47 = arith.constant 5.000000e-01 : f32
    %117 = vector.broadcast %cst_47 : f32 to vector<8x128xf32>
    %118 = arith.mulf %117, %9 : vector<8x128xf32>
    %119 = arith.subf %5, %118 : vector<8x128xf32>
    %cst_48 = arith.constant 5.000000e-01 : f32
    %120 = vector.broadcast %cst_48 : f32 to vector<8x128xf32>
    %121 = arith.mulf %120, %11 : vector<8x128xf32>
    %122 = arith.subf %7, %121 : vector<8x128xf32>
    %cst_49 = arith.constant 5.000000e-01 : f32
    %123 = vector.broadcast %cst_49 : f32 to vector<8x128xf32>
    %124 = arith.mulf %123, %9 : vector<8x128xf32>
    %125 = arith.addf %5, %124 : vector<8x128xf32>
    %cst_50 = arith.constant 5.000000e-01 : f32
    %126 = vector.broadcast %cst_50 : f32 to vector<8x128xf32>
    %127 = arith.mulf %126, %11 : vector<8x128xf32>
    %128 = arith.addf %7, %127 : vector<8x128xf32>
    %cst_51 = arith.constant 5.000000e-01 : f32
    %129 = vector.broadcast %cst_51 : f32 to vector<8x128xf32>
    %130 = arith.mulf %129, %17 : vector<8x128xf32>
    %131 = arith.subf %13, %130 : vector<8x128xf32>
    %cst_52 = arith.constant 5.000000e-01 : f32
    %132 = vector.broadcast %cst_52 : f32 to vector<8x128xf32>
    %133 = arith.mulf %132, %19 : vector<8x128xf32>
    %134 = arith.subf %15, %133 : vector<8x128xf32>
    %cst_53 = arith.constant 5.000000e-01 : f32
    %135 = vector.broadcast %cst_53 : f32 to vector<8x128xf32>
    %136 = arith.mulf %135, %17 : vector<8x128xf32>
    %137 = arith.addf %13, %136 : vector<8x128xf32>
    %cst_54 = arith.constant 5.000000e-01 : f32
    %138 = vector.broadcast %cst_54 : f32 to vector<8x128xf32>
    %139 = arith.mulf %138, %19 : vector<8x128xf32>
    %140 = arith.addf %15, %139 : vector<8x128xf32>
    %141 = arith.subf %125, %119 : vector<8x128xf32>
    %142 = arith.subf %128, %122 : vector<8x128xf32>
    %143 = arith.mulf %141, %142 : vector<8x128xf32>
    %144 = arith.subf %137, %131 : vector<8x128xf32>
    %145 = arith.subf %140, %134 : vector<8x128xf32>
    %146 = arith.mulf %144, %145 : vector<8x128xf32>
    %147 = arith.minimumf %125, %137 : vector<8x128xf32>
    %148 = arith.maximumf %119, %131 : vector<8x128xf32>
    %149 = arith.subf %147, %148 : vector<8x128xf32>
    %cst_55 = arith.constant 0.000000e+00 : f32
    %150 = vector.broadcast %cst_55 : f32 to vector<8x128xf32>
    %151 = arith.maximumf %149, %150 : vector<8x128xf32>
    %152 = arith.minimumf %128, %140 : vector<8x128xf32>
    %153 = arith.maximumf %122, %134 : vector<8x128xf32>
    %154 = arith.subf %152, %153 : vector<8x128xf32>
    %cst_56 = arith.constant 0.000000e+00 : f32
    %155 = vector.broadcast %cst_56 : f32 to vector<8x128xf32>
    %156 = arith.maximumf %154, %155 : vector<8x128xf32>
    %157 = arith.mulf %151, %156 : vector<8x128xf32>
    %158 = arith.addf %143, %146 : vector<8x128xf32>
    %159 = arith.subf %158, %157 : vector<8x128xf32>
    %160 = arith.maximumf %125, %137 : vector<8x128xf32>
    %161 = arith.minimumf %119, %131 : vector<8x128xf32>
    %162 = arith.subf %160, %161 : vector<8x128xf32>
    %cst_57 = arith.constant 0.000000e+00 : f32
    %163 = vector.broadcast %cst_57 : f32 to vector<8x128xf32>
    %164 = arith.maximumf %162, %163 : vector<8x128xf32>
    %165 = arith.maximumf %128, %140 : vector<8x128xf32>
    %166 = arith.minimumf %122, %134 : vector<8x128xf32>
    %167 = arith.subf %165, %166 : vector<8x128xf32>
    %cst_58 = arith.constant 0.000000e+00 : f32
    %168 = vector.broadcast %cst_58 : f32 to vector<8x128xf32>
    %169 = arith.maximumf %167, %168 : vector<8x128xf32>
    %170 = arith.mulf %164, %169 : vector<8x128xf32>
    %cst_59 = arith.constant 5.000000e-01 : f32
    %171 = vector.broadcast %cst_59 : f32 to vector<8x128xf32>
    %172 = arith.cmpf ogt, %36, %171 : vector<8x128xf32>
    %cst_60 = arith.constant 1.000000e+00 : f32
    %173 = vector.broadcast %cst_60 : f32 to vector<8x128xf32>
    %174 = arith.select %172, %159, %173 : vector<8x128xi1>, vector<8x128xf32>
    %cst_61 = arith.constant 5.000000e-01 : f32
    %175 = vector.broadcast %cst_61 : f32 to vector<8x128xf32>
    %176 = arith.cmpf ogt, %36, %175 : vector<8x128xf32>
    %cst_62 = arith.constant 1.000000e+00 : f32
    %177 = vector.broadcast %cst_62 : f32 to vector<8x128xf32>
    %178 = arith.select %176, %170, %177 : vector<8x128xi1>, vector<8x128xf32>
    %179 = arith.divf %157, %174 : vector<8x128xf32>
    %180 = arith.subf %170, %159 : vector<8x128xf32>
    %181 = arith.divf %180, %178 : vector<8x128xf32>
    %182 = arith.subf %179, %181 : vector<8x128xf32>
    %cst_63 = arith.constant 1.000000e+00 : f32
    %183 = vector.broadcast %cst_63 : f32 to vector<8x128xf32>
    %184 = arith.subf %183, %182 : vector<8x128xf32>
    %185 = arith.mulf %184, %36 : vector<8x128xf32>
    %186 = vector.shape_cast %185 : vector<8x128xf32> to vector<1x8x128xf32>
    %cst_64 = arith.constant dense<0.000000e+00> : vector<1xf32>
    %187 = vector.multi_reduction <add>, %186, %cst_64 [1, 2] : vector<1x8x128xf32> to vector<1xf32>
    %188 = vector.shape_cast %187 : vector<1xf32> to vector<1x1x1xf32>
    %189 = vector.extract %188[0, 0, 0] : f32 from vector<1x1x1xf32>
    %190 = arith.divf %189, %49 : f32
    %191 = tpu.iota {dimensions = array<i32: 1>} : vector<1x128xi32>
    %cst_65 = arith.constant 0.000000e+00 : f32
    %192 = vector.broadcast %cst_65 : f32 to vector<1x128xf32>
    %c0_i32_66 = arith.constant 0 : i32
    %193 = vector.broadcast %c0_i32_66 : i32 to vector<1x128xi32>
    %194 = arith.cmpi eq, %191, %193 : vector<1x128xi32>
    %195 = vector.broadcast %76 : f32 to vector<1x128xf32>
    %196 = arith.select %194, %195, %192 : vector<1x128xi1>, vector<1x128xf32>
    %c1_i32_67 = arith.constant 1 : i32
    %197 = vector.broadcast %c1_i32_67 : i32 to vector<1x128xi32>
    %198 = arith.cmpi eq, %191, %197 : vector<1x128xi32>
    %199 = vector.broadcast %89 : f32 to vector<1x128xf32>
    %200 = arith.select %198, %199, %196 : vector<1x128xi1>, vector<1x128xf32>
    %c2_i32_68 = arith.constant 2 : i32
    %201 = vector.broadcast %c2_i32_68 : i32 to vector<1x128xi32>
    %202 = arith.cmpi eq, %191, %201 : vector<1x128xi32>
    %203 = vector.broadcast %98 : f32 to vector<1x128xf32>
    %204 = arith.select %202, %203, %200 : vector<1x128xi1>, vector<1x128xf32>
    %c3_i32 = arith.constant 3 : i32
    %205 = vector.broadcast %c3_i32 : i32 to vector<1x128xi32>
    %206 = arith.cmpi eq, %191, %205 : vector<1x128xi32>
    %207 = vector.broadcast %116 : f32 to vector<1x128xf32>
    %208 = arith.select %206, %207, %204 : vector<1x128xi1>, vector<1x128xf32>
    %c4_i32 = arith.constant 4 : i32
    %209 = vector.broadcast %c4_i32 : i32 to vector<1x128xi32>
    %210 = arith.cmpi eq, %191, %209 : vector<1x128xi32>
    %211 = vector.broadcast %190 : f32 to vector<1x128xf32>
    %212 = arith.select %210, %211, %208 : vector<1x128xi1>, vector<1x128xf32>
    %c0_69 = arith.constant 0 : index
    %c0_70 = arith.constant 0 : index
    %213 = vector.load %arg3[%c0_69, %c0_70] : memref<1x128xf32, #tpu.memory_space<vmem>>, vector<1x128xf32>
    tpu.vector_store %arg3[%c0_69, %c0_70], %212 {strides = array<i32>} : memref<1x128xf32, #tpu.memory_space<vmem>>, vector<1x128xf32>,
    return
  }
  func.func @transform_0(%arg0: i32, %arg1: memref<8xi32, #tpu.memory_space<smem>>) -> (i32, i32, i32) {
    %c0_i32 = arith.constant 0 : i32
    %c0_i32_0 = arith.constant 0 : i32
    %c0_i32_1 = arith.constant 0 : i32
    %c0_i32_2 = arith.constant 0 : i32
    return %c0_i32, %c0_i32_0, %c0_i32_1 : i32, i32, i32
  }
  func.func @transform_1(%arg0: i32, %arg1: memref<8xi32, #tpu.memory_space<smem>>) -> (i32, i32) {
    %c0_i32 = arith.constant 0 : i32
    %c0_i32_0 = arith.constant 0 : i32
    %c0_i32_1 = arith.constant 0 : i32
    return %c0_i32, %c0_i32_0 : i32, i32
  }
}

</mosaic_0001>

<llo_original>
// kernel: _set_criterion_forward.1
$region0: #{_set_criterion_forward.1}
  #allocation0 [shape = 'u32[]', space=smem, size = 0x4, offset = 0x4, fixed_abs, tag = 'smem constant byte address 0x4 - core index']
  #allocation1 [shape = 'u32[72,128]{1,0:T(1,128)}', space=vmem, size = 0x9000, scoped, tag = 'internal scratch']
  #allocation2 [shape = 's32[1]{0}', space=sflag, size = 0x4, scoped, tag = 'scoped memory for _set_criterion_forward.1']
  #allocation3 [shape = 'u8[512]{0}', space=smem, size = 0x200, scoped, tag = 'prefetched SMEM operand 0']
  %s0 = inlined_call_operand.vmem [shape: s32[8], index: 0, kind: input, shape index: {}]
  %s1 = inlined_call_operand.vmem [shape: f32[10,8,128], index: 1, kind: input, shape index: {}]
  %s2 = inlined_call_operand.vmem [shape: f32[1,128], index: 2, kind: output, shape index: {}]
  %s3 = sld [smem:[#allocation0]]
  $region14: #{_set_criterion_forward.1} parent=0
    _
  %s5 = ssub.s32 1, %s3
  %s6 = scalar_select 0, %s5, %s3
  %s8 = sshll.u32 %s0, 4
  %s9 = int_to_ptr.vmem [resolvable:$true] %s8
  %11 = dma.vmem_to_smem %s9, 16, [#allocation3], [#allocation2]
  %13 = dma.done [#allocation2], 16
  %14 = sfence
  // Predicated region
  $region2: #{_set_criterion_forward.1} parent=0 // pred_check
    _
  $region3: #{_set_criterion_forward.1} parent=0 // pred_check_branch
    %16 = sbr.rel (0) target = $region5
  $region4: #{_set_criterion_forward.1} parent=0 // pred_region
    _
  $region5: #{_set_criterion_forward.1} parent=0 // pred_fallthru
    _
  %v17 = vld [vmem:[%s1] sm:$0xff]
  %s18 = scalar_lea.vmem %s1, 8
  %v19 = vld [vmem:[%s18] sm:$0xff]
  %s20 = scalar_lea.vmem %s1, 16
  %v21 = vld [vmem:[%s20] sm:$0xff]
  %s22 = scalar_lea.vmem %s1, 24
  %v23 = vld [vmem:[%s22] sm:$0xff]
  %s24 = scalar_lea.vmem %s1, 32
  %v25 = vld [vmem:[%s24] sm:$0xff]
  %s26 = scalar_lea.vmem %s1, 40
  %v27 = vld [vmem:[%s26] sm:$0xff]
  %s28 = scalar_lea.vmem %s1, 48
  %v29 = vld [vmem:[%s28] sm:$0xff]
  %s30 = scalar_lea.vmem %s1, 56
  %v31 = vld [vmem:[%s30] sm:$0xff]
  %s32 = scalar_lea.vmem %s1, 64
  %v33 = vld [vmem:[%s32] sm:$0xff]
  %s34 = scalar_lea.vmem %s1, 72
  %v35 = vld [vmem:[%s34] sm:$0xff]
  %v36 = vlaneseq
  %v37 = vshrl.u32 %v36, 7
  %v38 = vlaneseq
  %v39 = vand.u32 %v38, 127
  %vm40 = vcmp.eq.s32.totalorder %v37, 0
  %s41 = sld [smem:[#allocation3]]
  %v42 = vstv %s41
  %v43 = vsel %vm40, %v42, 0
  %vm44 = vcmp.eq.s32.totalorder %v37, 1
  %s45 = sld [smem:[#allocation3 + $0x1]]
  %v46 = vstv %s45
  %v47 = vsel %vm44, %v46, %v43
  %vm48 = vcmp.lt.s32.totalorder %v39, %v47
  %v49 = vsel %vm48, 1.0, 0.0
  %vm50 = vcmp.lt.s32.totalorder %v37, 2
  %vm51 = vcmp.lt.s32.totalorder %v39, 8
  %vm52 = vmand %vm50, %vm51
  %v53 = vsel %vm52, 1.0, 0.0
  %54 = vadd.xlane.f32.xlu0 %v49
  %v55 = vpop.xlane.xlu0 %54
  %v56 = vrot.slane %v55, 4
  %v57 = vadd.f32 %v55, %v56
  %v58 = vrot.slane %v57, 2
  %v59 = vadd.f32 %v57, %v58
  %v60 = vrot.slane %v59, 1
  %v61 = vadd.f32 %v59, %v60
  %s62 = vtos %v61
  %s63 = smax.f32 %s62, 1.0
  %v64 = vsub.f32 %v17, %v19
  %v65 = vmul.f32 %v49, 2.0
  %v66 = vsub.f32 1.0, %v65
  %v67 = vmul.f32 %v64, %v66
  %v68 = vmax.f32 %v67, 0.0
  %v69 = vand.u32 2147483647, %v67
  %v70 = vsub.f32 0.0, %v69
  %v71 = vmul.f32 %v70, 1.442695
  %v72 = vpow.pop %v71
  %v73 = vadd.f32 %v72, 1.0
  %v74 = vlog2.pop %v73
  %v75 = vmul.f32 %v74, 0.6931472
  %v76 = vadd.f32 %v68, %v75
  %v77 = vmul.f32 %v49, 0.9
  %v78 = vadd.f32 %v77, 0.1
  %v79 = vmul.f32 %v78, %v53
  %v80 = vmul.f32 %v76, %v79
  %81 = vadd.xlane.f32.xlu0 %v80
  %v82 = vpop.xlane.xlu0 %81
  %v83 = vrot.slane %v82, 4
  %v84 = vadd.f32 %v82, %v83
  %v85 = vrot.slane %v84, 2
  %v86 = vadd.f32 %v84, %v85
  %v87 = vrot.slane %v86, 1
  %v88 = vadd.f32 %v86, %v87
  %s89 = vtos %v88
  %s90 = smul.f32 %s89, 0.0625
  %vm91 = vcmp.ge.f32.partialorder %v17, %v19
  %v92 = vsel %vm91, 1.0, 0.0
  %v93 = vmul.f32 %v92, %v53
  %v94 = vmul.f32 %v93, %v49
  %95 = vadd.xlane.f32.xlu0 %v94
  %v96 = vpop.xlane.xlu0 %95
  %v97 = vrot.slane %v96, 4
  %v98 = vadd.f32 %v96, %v97
  %v99 = vrot.slane %v98, 2
  %v100 = vadd.f32 %v98, %v99
  %v101 = vrot.slane %v100, 1
  %v102 = vadd.f32 %v100, %v101
  %s103 = vtos %v102
  %s104 = smul.f32 %s103, 100.0
  %v105 = vstv %s63
  %v106 = vrcp.pop %v105
  %v107 = vmul.f32 %v105, %v106
  %v108 = vsub.f32 1.0, %v107
  %v109 = vmul.f32 %v106, %v108
  %v110 = vadd.f32 %v106, %v109
  %vm111 = vweird.f32 %v105
  %vm112 = vweird.f32 %v106
  %vm113 = vmor %vm111, %vm112
  %v114 = vsel %vm113, %v106, %v110
  %v115 = vand.u32 2147483647, %v105
  %vm116 = vcmp.eq.f32.partialorder %v115, 8.507059e+37
  %v117 = vand.u32 %v105, 2147483648
  %v118 = vor.u32 1.1754944e-38, %v117
  %v119 = vsel %vm116, %v118, %v114
  %s120 = vtos %v119
  %s121 = smul.f32 %s104, %s120
  %s122 = ssub.f32 100.0, %s121
  %v123 = vsub.f32 %v93, %v49
  %124 = vadd.xlane.f32.xlu0 %v123
  %v125 = vpop.xlane.xlu0 %124
  %v126 = vand.u32 2147483647, %v125
  %vm127 = vcmask 7168
  %v128 = vsel %vm127, %v126, 0.0
  %129 = vadd.xlane.f32.xlu0 %v128
  %v130 = vpop.xlane.xlu0 %129
  %v131 = vrot.slane %v130, 4
  %v132 = vadd.f32 %v130, %v131
  %v133 = vrot.slane %v132, 2
  %v134 = vadd.f32 %v132, %v133
  %v135 = vrot.slane %v134, 1
  %v136 = vadd.f32 %v134, %v135
  %s137 = vtos %v136
  %s138 = smul.f32 %s137, 0.5
  %v139 = vsub.f32 %v21, %v29
  %v140 = vand.u32 2147483647, %v139
  %v141 = vsub.f32 %v23, %v31
  %v142 = vand.u32 2147483647, %v141
  %v143 = vadd.f32 %v140, %v142
  %v144 = vsub.f32 %v25, %v33
  %v145 = vand.u32 2147483647, %v144
  %v146 = vadd.f32 %v143, %v145
  %v147 = vsub.f32 %v27, %v35
  %v148 = vand.u32 2147483647, %v147
  %v149 = vadd.f32 %v146, %v148
  %v150 = vmul.f32 %v149, %v49
  %151 = vadd.xlane.f32.xlu0 %v150
  %v152 = vpop.xlane.xlu0 %151
  %v153 = vrot.slane %v152, 4
  %v154 = vadd.f32 %v152, %v153
  %v155 = vrot.slane %v154, 2
  %v156 = vadd.f32 %v154, %v155
  %v157 = vrot.slane %v156, 1
  %v158 = vadd.f32 %v156, %v157
  %s159 = vtos %v158
  %s160 = smul.f32 %s63, 4.0
  %v161 = vstv %s160
  %v162 = vrcp.pop %v161
  %v163 = vmul.f32 %v161, %v162
  %v164 = vsub.f32 1.0, %v163
  %v165 = vmul.f32 %v162, %v164
  %v166 = vadd.f32 %v162, %v165
  %vm167 = vweird.f32 %v161
  %vm168 = vweird.f32 %v162
  %vm169 = vmor %vm167, %vm168
  %v170 = vsel %vm169, %v162, %v166
  %v171 = vand.u32 2147483647, %v161
  %vm172 = vcmp.eq.f32.partialorder %v171, 8.507059e+37
  %v173 = vand.u32 %v161, 2147483648
  %v174 = vor.u32 1.1754944e-38, %v173
  %v175 = vsel %vm172, %v174, %v170
  %s176 = vtos %v175
  %s177 = smul.f32 %s159, %s176
  %v178 = vmul.f32 %v25, 0.5
  %v179 = vsub.f32 %v21, %v178
  %v180 = vmul.f32 %v27, 0.5
  %v181 = vsub.f32 %v23, %v180
  %v182 = vadd.f32 %v21, %v178
  %v183 = vadd.f32 %v23, %v180
  %v184 = vmul.f32 %v33, 0.5
  %v185 = vsub.f32 %v29, %v184
  %v186 = vmul.f32 %v35, 0.5
  %v187 = vsub.f32 %v31, %v186
  %v188 = vadd.f32 %v29, %v184
  %v189 = vadd.f32 %v31, %v186
  %v190 = vsub.f32 %v182, %v179
  %v191 = vsub.f32 %v183, %v181
  %v192 = vmul.f32 %v190, %v191
  %v193 = vsub.f32 %v188, %v185
  %v194 = vsub.f32 %v189, %v187
  %v195 = vmul.f32 %v193, %v194
  %v196 = vmin.f32 %v182, %v188
  %v197 = vmax.f32 %v179, %v185
  %v198 = vsub.f32 %v196, %v197
  %v199 = vmax.f32 %v198, 0.0
  %v200 = vmin.f32 %v183, %v189
  %v201 = vmax.f32 %v181, %v187
  %v202 = vsub.f32 %v200, %v201
  %v203 = vmax.f32 %v202, 0.0
  %v204 = vmul.f32 %v199, %v203
  %v205 = vadd.f32 %v192, %v195
  %v206 = vsub.f32 %v205, %v204
  %v207 = vmax.f32 %v182, %v188
  %v208 = vmin.f32 %v179, %v185
  %v209 = vsub.f32 %v207, %v208
  %v210 = vmax.f32 %v209, 0.0
  %v211 = vmax.f32 %v183, %v189
  %v212 = vmin.f32 %v181, %v187
  %v213 = vsub.f32 %v211, %v212
  %v214 = vmax.f32 %v213, 0.0
  %v215 = vmul.f32 %v210, %v214
  %vm216 = vcmp.gt.f32.partialorder %v49, 0.5
  %v217 = vsel %vm216, %v206, 1.0
  %v218 = vsel %vm216, %v215, 1.0
  %v219 = vrcp.pop %v217
  %v220 = vmul.f32 %v217, %v219
  %v221 = vsub.f32 1.0, %v220
  %v222 = vmul.f32 %v219, %v221
  %v223 = vadd.f32 %v219, %v222
  %vm224 = vweird.f32 %v217
  %vm225 = vweird.f32 %v219
  %vm226 = vmor %vm224, %vm225
  %v227 = vsel %vm226, %v219, %v223
  %v228 = vand.u32 2147483647, %v217
  %vm229 = vcmp.eq.f32.partialorder %v228, 8.507059e+37
  %v230 = vand.u32 %v217, 2147483648
  %v231 = vor.u32 1.1754944e-38, %v230
  %v232 = vsel %vm229, %v231, %v227
  %v233 = vmul.f32 %v204, %v232
  %v234 = vsub.f32 %v215, %v206
  %v235 = vrcp.pop %v218
  %v236 = vmul.f32 %v218, %v235
  %v237 = vsub.f32 1.0, %v236
  %v238 = vmul.f32 %v235, %v237
  %v239 = vadd.f32 %v235, %v238
  %vm240 = vweird.f32 %v218
  %vm241 = vweird.f32 %v235
  %vm242 = vmor %vm240, %vm241
  %v243 = vsel %vm242, %v235, %v239
  %v244 = vand.u32 2147483647, %v218
  %vm245 = vcmp.eq.f32.partialorder %v244, 8.507059e+37
  %v246 = vand.u32 %v218, 2147483648
  %v247 = vor.u32 1.1754944e-38, %v246
  %v248 = vsel %vm245, %v247, %v243
  %v249 = vmul.f32 %v234, %v248
  %v250 = vsub.f32 %v233, %v249
  %v251 = vsub.f32 1.0, %v250
  %v252 = vmul.f32 %v251, %v49
  %253 = vadd.xlane.f32.xlu0 %v252
  %v254 = vpop.xlane.xlu0 %253
  %v255 = vrot.slane %v254, 4
  %v256 = vadd.f32 %v254, %v255
  %v257 = vrot.slane %v256, 2
  %v258 = vadd.f32 %v256, %v257
  %v259 = vrot.slane %v258, 1
  %v260 = vadd.f32 %v258, %v259
  %s261 = vtos %v260
  %v262 = vstv %s63
  %v263 = vrcp.pop %v262
  %v264 = vmul.f32 %v262, %v263
  %v265 = vsub.f32 1.0, %v264
  %v266 = vmul.f32 %v263, %v265
  %v267 = vadd.f32 %v263, %v266
  %vm268 = vweird.f32 %v262
  %vm269 = vweird.f32 %v263
  %vm270 = vmor %vm268, %vm269
  %v271 = vsel %vm270, %v263, %v267
  %v272 = vand.u32 2147483647, %v262
  %vm273 = vcmp.eq.f32.partialorder %v272, 8.507059e+37
  %v274 = vand.u32 %v262, 2147483648
  %v275 = vor.u32 1.1754944e-38, %v274
  %v276 = vsel %vm273, %v275, %v271
  %s277 = vtos %v276
  %s278 = smul.f32 %s261, %s277
  %vm279 = vcmp.eq.s32.totalorder %v39, 0
  %v280 = vstv %s90
  %v281 = vsel %vm279, %v280, 0.0
  %vm282 = vcmp.eq.s32.totalorder %v39, 1
  %v283 = vstv %s122
  %v284 = vsel %vm282, %v283, %v281
  %vm285 = vcmp.eq.s32.totalorder %v39, 2
  %v286 = vstv %s138
  %v287 = vsel %vm285, %v286, %v284
  %vm288 = vcmp.eq.s32.totalorder %v39, 3
  %v289 = vstv %s177
  %v290 = vsel %vm288, %v289, %v287
  %vm291 = vcmp.eq.s32.totalorder %v39, 4
  %v292 = vstv %s278
  %v293 = vsel %vm291, %v292, %v290
  %294 = vst [vmem:[%s2] sm:$0x1] %v293
  // Predicated region
  $region6: #{_set_criterion_forward.1} parent=0 // pred_check
    _
  $region7: #{_set_criterion_forward.1} parent=0 // pred_check_branch
    %296 = sbr.rel (0) target = $region9
  $region8: #{_set_criterion_forward.1} parent=0 // pred_region
    _
  $region9: #{_set_criterion_forward.1} parent=0 // pred_fallthru
    _
  // Predicated region
  $region10: #{_set_criterion_forward.1} parent=0 // pred_check
    _
  $region11: #{_set_criterion_forward.1} parent=0 // pred_check_branch
    %298 = sbr.rel (0) target = $region13
  $region12: #{_set_criterion_forward.1} parent=0 // pred_region
    _
  $region13: #{_set_criterion_forward.1} parent=0 // pred_fallthru
    _

</llo_original>
